<compile_context>
chip_gen: v6e
topology: v6e:2x2x1
jax: 0.10.0
libtpu: 0.0.40
codegen_flags: <defaults>
</compile_context>

<pallas_src>
import functools

import jax
import jax.numpy as jnp
from jax.experimental import pallas as pl
from jax.experimental.pallas import tpu as pltpu


def _focal_loss_kernel(logits_ref, target_ref, out_ref, *,
                       gamma, alpha_vals, tile_pixels, valid_pixels, need_mask):
    j = pl.program_id(1)

    x = logits_ref[0].astype(jnp.float32)          # (C, R, 128) f32
    t = target_ref[0, 0]                           # (R, 128)    i32
    C, R, _ = x.shape

    # log-softmax over the class axis (axis 0) -- elementwise across class slabs.
    m = jnp.max(x, axis=0, keepdims=True)          # (1, R, 128)
    z = x - m
    lse = jnp.log(jnp.sum(jnp.exp(z), axis=0, keepdims=True))
    logsm = z - lse                                # (C, R, 128)

    # gather log p_t at the target class via one-hot select over class slabs.
    cls = jax.lax.broadcasted_iota(jnp.int32, (C, 1, 1), 0)
    onehot = (t[None, :, :] == cls).astype(jnp.float32)
    logpt = jnp.sum(logsm * onehot, axis=0)        # (R, 128)
    pt = jnp.exp(logpt)

    # alpha gather: at = alpha[target]  (alpha baked as compile-time constants).
    # NOTE: targets >= len(alpha_vals) contribute zero weight (PyTorch's
    # alpha.gather would raise in that case).
    if alpha_vals is not None:
        at = jnp.zeros_like(pt)
        for k, a_k in enumerate(alpha_vals):
            at = at + jnp.float32(a_k) * (t == k).astype(jnp.float32)
        logpt = logpt * at

    # focal factor (1 - pt) ** gamma: integer gamma -> pure VPU multiplies.
    one_minus_pt = 1.0 - pt
    g = float(gamma)
    if g == 0.0:
        focal = jnp.ones_like(pt)
    elif g.is_integer() and 0.0 < g <= 8.0:
        focal = one_minus_pt
        for _ in range(int(g) - 1):
            focal = focal * one_minus_pt
    else:
        focal = one_minus_pt ** g

    loss = -focal * logpt                          # (R, 128)

    if need_mask:
        rows = jax.lax.broadcasted_iota(jnp.int32, (R, 128), 0)
        lanes = jax.lax.broadcasted_iota(jnp.int32, (R, 128), 1)
        gid = j * tile_pixels + rows * 128 + lanes
        loss = jnp.where(gid < valid_pixels, loss, 0.0)

    # Per-tile partial sum: elementwise vreg adds down to (8, 128); the single
    # cross-lane reduce to a scalar happens once, in the wrapper.
    partial = jnp.sum(loss.reshape(R // 8, 8, 128), axis=0)   # (8, 128)

    @pl.when(j == 0)
    def _():
        out_ref[...] = jnp.zeros_like(out_ref)

    out_ref[...] = out_ref[...] + partial[None, :, :]


def multi_class_focal_loss(logits_nchw, target_nhw, *, gamma=2.0, alpha=0.25,
                           size_average=True, pixel_tile=None):
    """Forward pass of MultiClassFocalLoss on TPU via Pallas."""
    N, C, H, W = logits_nchw.shape
    L = H * W
    M = N * L

    # alpha setup, as in the PyTorch __init__ (float -> [alpha, 1 - alpha]).
    if alpha is None:
        alpha_vals = None
    elif isinstance(alpha, (float, int)):
        alpha_vals = (float(alpha), 1.0 - float(alpha))
    else:
        alpha_vals = tuple(float(a) for a in alpha)

    # Pixel tile T: multiple of 1024, sized for a conservative double-buffered
    # VMEM budget (v5e 16 MiB default scoped VMEM is the tightest).
    itemsize = jnp.dtype(logits_nchw.dtype).itemsize
    bytes_per_pixel = C * itemsize + 4             # logits + int32 target
    if pixel_tile is None:
        budget = 8 * 1024 * 1024
        T = budget // (2 * bytes_per_pixel)
        T = max(1024, (T // 1024) * 1024)
        T = min(T, 256 * 1024)
    else:
        T = int(pixel_tile)
    L_ceil = ((L + 1023) // 1024) * 1024
    T = min(T, L_ceil)
    num_tiles = -(-L // T)
    L_pad = num_tiles * T
    need_mask = (L_pad != L)

    # NCHW -> (N, C, L): free reshape (no transpose, no extra HBM pass).
    logits3 = logits_nchw.reshape(N, C, L)
    target3 = target_nhw.reshape(N, 1, L).astype(jnp.int32)
    if need_mask:
        logits3 = jnp.pad(logits3, ((0, 0), (0, 0), (0, L_pad - L)))
        target3 = jnp.pad(target3, ((0, 0), (0, 0), (0, L_pad - L)))

    # Lane-dense 4-D view: pixels fill sublanes and lanes completely.
    Rtot = L_pad // 128
    R = T // 128
    logits4 = logits3.reshape(N, C, Rtot, 128)
    target4 = target3.reshape(N, 1, Rtot, 128)

    kernel = functools.partial(
        _focal_loss_kernel, gamma=float(gamma), alpha_vals=alpha_vals,
        tile_pixels=T, valid_pixels=L, need_mask=need_mask)

    partials = pl.pallas_call(
        kernel,
        out_shape=jax.ShapeDtypeStruct((N, 8, 128), jnp.float32),
        grid_spec=pltpu.PrefetchScalarGridSpec(
            num_scalar_prefetch=0,
            grid=(N, num_tiles),
            in_specs=[
                pl.BlockSpec((1, C, R, 128), lambda n, j: (n, 0, j, 0)),
                pl.BlockSpec((1, 1, R, 128), lambda n, j: (n, 0, j, 0)),
            ],
            out_specs=pl.BlockSpec((1, 8, 128), lambda n, j: (n, 0, 0)),
        ),
        compiler_params=pltpu.CompilerParams(
            dimension_semantics=("parallel", "arbitrary")),
    )(logits4, target4)

    total = jnp.sum(partials)
    if size_average:
        total = total / jnp.float32(M)
    return total


def _reference_focal_loss(logits_nchw, target_nhw, gamma=2.0, alpha=0.25,
                          size_average=True):
    """Pure-JAX reference mirroring the PyTorch forward, for verification."""
    N, C, H, W = logits_nchw.shape
    x = jnp.transpose(logits_nchw, (0, 2, 3, 1)).reshape(-1, C).astype(jnp.float32)
    t = target_nhw.reshape(-1).astype(jnp.int32)
    alpha_vec = jnp.array([alpha, 1.0 - alpha], dtype=jnp.float32)
    logsm = jax.nn.log_softmax(x, axis=1)
    logpt = jnp.take_along_axis(logsm, t[:, None], axis=1)[:, 0]
    pt = jnp.exp(logpt)
    at = alpha_vec[t]
    logpt = logpt * at
    loss = -1.0 * (1.0 - pt) ** gamma * logpt
    return jnp.mean(loss) if size_average else jnp.sum(loss)


if __name__ == "__main__":
    # Deterministic small inputs: logits [2, 2, 16, 16], targets in {0, 1}
    # (alpha has 2 entries, so valid class indices are 0/1, matching PyTorch).
    key = jax.random.PRNGKey(0)
    k1, k2 = jax.random.split(key)
    N, C, H, W = 2, 2, 16, 16
    logits = jax.random.normal(k1, (N, C, H, W), dtype=jnp.float32)
    target = jax.random.randint(k2, (N, H, W), 0, C, dtype=jnp.int32)

    loss = multi_class_focal_loss(logits, target, gamma=2.0, alpha=0.25,
                                  size_average=True)
    loss = jax.block_until_ready(loss)

    ref = _reference_focal_loss(logits, target)
    assert jnp.allclose(loss, ref, rtol=1e-5, atol=1e-6), (loss, ref)
    print("KERNEL_OK")
</pallas_src>

<mosaic_0001>
module attributes {stable_mosaic.version = 11 : i64} {
  func.func @_focal_loss_kernel(%arg0: i32, %arg1: i32, %arg2: memref<1x2x8x128xf32, #tpu.memory_space<vmem>>, %arg3: memref<1x1x8x128xi32, #tpu.memory_space<vmem>>, %arg4: memref<1x8x128xf32, #tpu.memory_space<vmem>>) attributes {dimension_semantics = [#tpu.dimension_semantics<parallel>, #tpu.dimension_semantics<arbitrary>], iteration_bounds = array<i64: 2, 1>, scalar_prefetch = 0 : i64, scratch_operands = 0 : i64, tpu.core_type = #tpu.core_type<tc>, window_params = [{transform_indices = @transform_0, window_bounds = array<i64: 1, 2, 8, 128>}, {transform_indices = @transform_1, window_bounds = array<i64: 1, 1, 8, 128>}, {transform_indices = @transform_2, window_bounds = array<i64: 1, 8, 128>}]} {
    %c0 = arith.constant 0 : index
    %c0_0 = arith.constant 0 : index
    %c0_1 = arith.constant 0 : index
    %c0_2 = arith.constant 0 : index
    %0 = vector.load %arg2[%c0, %c0_0, %c0_1, %c0_2] : memref<1x2x8x128xf32, #tpu.memory_space<vmem>>, vector<1x2x8x128xf32>
    %1 = vector.shape_cast %0 : vector<1x2x8x128xf32> to vector<2x8x128xf32>
    %c0_3 = arith.constant 0 : index
    %c0_4 = arith.constant 0 : index
    %c0_5 = arith.constant 0 : index
    %c0_6 = arith.constant 0 : index
    %2 = vector.load %arg3[%c0_3, %c0_4, %c0_5, %c0_6] : memref<1x1x8x128xi32, #tpu.memory_space<vmem>>, vector<1x1x8x128xi32>
    %3 = vector.shape_cast %2 : vector<1x1x8x128xi32> to vector<8x128xi32>
    %cst = arith.constant dense<0xFF800000> : vector<8x128xf32>
    %4 = vector.multi_reduction <maximumf>, %1, %cst [0] : vector<2x8x128xf32> to vector<8x128xf32>
    %5 = vector.shape_cast %4 : vector<8x128xf32> to vector<1x8x128xf32>
    %6 = vector.broadcast %5 : vector<1x8x128xf32> to vector<2x8x128xf32>
    %7 = arith.subf %1, %6 : vector<2x8x128xf32>
    %8 = math.exp %7 : vector<2x8x128xf32>
    %cst_7 = arith.constant dense<0.000000e+00> : vector<8x128xf32>
    %9 = vector.multi_reduction <add>, %8, %cst_7 [0] : vector<2x8x128xf32> to vector<8x128xf32>
    %10 = vector.shape_cast %9 : vector<8x128xf32> to vector<1x8x128xf32>
    %11 = math.log %10 : vector<1x8x128xf32>
    %12 = vector.broadcast %11 : vector<1x8x128xf32> to vector<2x8x128xf32>
    %13 = arith.subf %7, %12 : vector<2x8x128xf32>
    %14 = tpu.iota {dimensions = array<i32: 0>} : vector<2x1x1xi32>
    %15 = vector.shape_cast %3 : vector<8x128xi32> to vector<1x8x128xi32>
    %16 = vector.broadcast %15 : vector<1x8x128xi32> to vector<2x8x128xi32>
    %17 = vector.broadcast %14 : vector<2x1x1xi32> to vector<2x8x128xi32>
    %18 = arith.cmpi eq, %16, %17 : vector<2x8x128xi32>
    %19 = arith.extui %18 : vector<2x8x128xi1> to vector<2x8x128xi32>
    %20 = arith.sitofp %19 : vector<2x8x128xi32> to vector<2x8x128xf32>
    %21 = arith.mulf %13, %20 : vector<2x8x128xf32>
    %cst_8 = arith.constant dense<0.000000e+00> : vector<8x128xf32>
    %22 = vector.multi_reduction <add>, %21, %cst_8 [0] : vector<2x8x128xf32> to vector<8x128xf32>
    %23 = math.exp %22 : vector<8x128xf32>
    %cst_9 = arith.constant 0.000000e+00 : f32
    %24 = vector.broadcast %cst_9 : f32 to vector<8x128xf32>
    %c0_i32 = arith.constant 0 : i32
    %25 = vector.broadcast %c0_i32 : i32 to vector<8x128xi32>
    %26 = arith.cmpi eq, %3, %25 : vector<8x128xi32>
    %27 = arith.extui %26 : vector<8x128xi1> to vector<8x128xi32>
    %28 = arith.sitofp %27 : vector<8x128xi32> to vector<8x128xf32>
    %cst_10 = arith.constant 2.500000e-01 : f32
    %29 = vector.broadcast %cst_10 : f32 to vector<8x128xf32>
    %30 = arith.mulf %29, %28 : vector<8x128xf32>
    %31 = arith.addf %24, %30 : vector<8x128xf32>
    %c1_i32 = arith.constant 1 : i32
    %32 = vector.broadcast %c1_i32 : i32 to vector<8x128xi32>
    %33 = arith.cmpi eq, %3, %32 : vector<8x128xi32>
    %34 = arith.extui %33 : vector<8x128xi1> to vector<8x128xi32>
    %35 = arith.sitofp %34 : vector<8x128xi32> to vector<8x128xf32>
    %cst_11 = arith.constant 7.500000e-01 : f32
    %36 = vector.broadcast %cst_11 : f32 to vector<8x128xf32>
    %37 = arith.mulf %36, %35 : vector<8x128xf32>
    %38 = arith.addf %31, %37 : vector<8x128xf32>
    %39 = arith.mulf %22, %38 : vector<8x128xf32>
    %cst_12 = arith.constant 1.000000e+00 : f32
    %40 = vector.broadcast %cst_12 : f32 to vector<8x128xf32>
    %41 = arith.subf %40, %23 : vector<8x128xf32>
    %42 = arith.mulf %41, %41 : vector<8x128xf32>
    %cst_13 = arith.constant 0.000000e+00 : f32
    %43 = vector.broadcast %cst_13 : f32 to vector<8x128xf32>
    %44 = arith.subf %43, %42 : vector<8x128xf32>
    %45 = arith.mulf %44, %39 : vector<8x128xf32>
    %46 = tpu.iota {dimensions = array<i32: 0>} : vector<8x128xi32>
    %47 = tpu.iota {dimensions = array<i32: 1>} : vector<8x128xi32>
    %c1024_i32 = arith.constant 1024 : i32
    %48 = arith.muli %arg1, %c1024_i32 : i32
    %c128_i32 = arith.constant 128 : i32
    %49 = vector.broadcast %c128_i32 : i32 to vector<8x128xi32>
    %50 = arith.muli %46, %49 : vector<8x128xi32>
    %51 = vector.broadcast %48 : i32 to vector<8x128xi32>
    %52 = arith.addi %51, %50 : vector<8x128xi32>
    %53 = arith.addi %52, %47 : vector<8x128xi32>
    %c256_i32 = arith.constant 256 : i32
    %54 = vector.broadcast %c256_i32 : i32 to vector<8x128xi32>
    %55 = arith.cmpi slt, %53, %54 : vector<8x128xi32>
    %cst_14 = arith.constant 0.000000e+00 : f32
    %56 = vector.broadcast %cst_14 : f32 to vector<8x128xf32>
    %57 = arith.select %55, %45, %56 : vector<8x128xi1>, vector<8x128xf32>
    %58 = vector.shape_cast %57 : vector<8x128xf32> to vector<1x8x128xf32>
    %cst_15 = arith.constant dense<0.000000e+00> : vector<8x128xf32>
    %59 = vector.multi_reduction <add>, %58, %cst_15 [0] : vector<1x8x128xf32> to vector<8x128xf32>
    %c0_i32_16 = arith.constant 0 : i32
    %60 = arith.cmpi eq, %arg1, %c0_i32_16 : i32
    %61 = arith.extui %60 : i1 to i32
    %c0_i32_17 = arith.constant 0 : i32
    %62 = arith.cmpi ne, %61, %c0_i32_17 : i32
    scf.if %62 {
      %cst_24 = arith.constant 0.000000e+00 : f32
      %67 = vector.broadcast %cst_24 : f32 to vector<1x8x128xf32>
      %c0_25 = arith.constant 0 : index
      %c0_26 = arith.constant 0 : index
      %c0_27 = arith.constant 0 : index
      %68 = vector.load %arg4[%c0_25, %c0_26, %c0_27] : memref<1x8x128xf32, #tpu.memory_space<vmem>>, vector<1x8x128xf32>
      tpu.vector_store %arg4[%c0_25, %c0_26, %c0_27], %67 {strides = array<i32>} : memref<1x8x128xf32, #tpu.memory_space<vmem>>, vector<1x8x128xf32>,
    } else {
    }
    %c0_18 = arith.constant 0 : index
    %c0_19 = arith.constant 0 : index
    %c0_20 = arith.constant 0 : index
    %63 = vector.load %arg4[%c0_18, %c0_19, %c0_20] : memref<1x8x128xf32, #tpu.memory_space<vmem>>, vector<1x8x128xf32>
    %64 = vector.shape_cast %59 : vector<8x128xf32> to vector<1x8x128xf32>
    %65 = arith.addf %63, %64 : vector<1x8x128xf32>
    %c0_21 = arith.constant 0 : index
    %c0_22 = arith.constant 0 : index
    %c0_23 = arith.constant 0 : index
    %66 = vector.load %arg4[%c0_21, %c0_22, %c0_23] : memref<1x8x128xf32, #tpu.memory_space<vmem>>, vector<1x8x128xf32>
    tpu.vector_store %arg4[%c0_21, %c0_22, %c0_23], %65 {strides = array<i32>} : memref<1x8x128xf32, #tpu.memory_space<vmem>>, vector<1x8x128xf32>,
    return
  }
  func.func @transform_0(%arg0: i32, %arg1: i32) -> (i32, i32, i32, i32) {
    %c0_i32 = arith.constant 0 : i32
    %c0_i32_0 = arith.constant 0 : i32
    %c0_i32_1 = arith.constant 0 : i32
    return %arg0, %c0_i32, %arg1, %c0_i32_0 : i32, i32, i32, i32
  }
  func.func @transform_1(%arg0: i32, %arg1: i32) -> (i32, i32, i32, i32) {
    %c0_i32 = arith.constant 0 : i32
    %c0_i32_0 = arith.constant 0 : i32
    %c0_i32_1 = arith.constant 0 : i32
    return %arg0, %c0_i32, %arg1, %c0_i32_0 : i32, i32, i32, i32
  }
  func.func @transform_2(%arg0: i32, %arg1: i32) -> (i32, i32, i32) {
    %c0_i32 = arith.constant 0 : i32
    %c0_i32_0 = arith.constant 0 : i32
    %c0_i32_1 = arith.constant 0 : i32
    return %arg0, %c0_i32, %c0_i32_0 : i32, i32, i32
  }
}

</mosaic_0001>

<llo_original>
// kernel: tpu_custom_call.1
$region0: #{tpu_custom_call.1}
  #allocation0 [shape = 'u32[]', space=smem, size = 0x4, offset = 0x4, fixed_abs, tag = 'smem constant byte address 0x4 - core index']
  #allocation1 [shape = 'u32[144,128]{1,0:T(1,128)}', space=vmem, size = 0x12000, scoped, tag = 'internal scratch']
  %s0 = inlined_call_operand.hbm [shape: f32[2,2,8,128], index: 0, kind: input, shape index: {}]
  %s1 = inlined_call_operand.hbm [shape: s32[2,1,8,128], index: 1, kind: input, shape index: {}]
  %s2 = inlined_call_operand.hbm [shape: f32[2,8,128], index: 2, kind: output, shape index: {}]
  %s3 = sld [smem:[#allocation0]]
  $region53: #{tpu_custom_call.1} parent=0
    _
  %s5 = ssub.s32 1, %s3
  %s6 = scalar_select 0, %s5, %s3
  $region1: #{tpu_custom_call.1} parent=0
    #allocation2 [shape = 'u8[16384]{0}', space=vmem, size = 0x4000, scoped, tag = 'input window, operand 0']
    #allocation3 [shape = 's32[2]{0}', space=sflag, size = 0x8, scoped, tag = 'scoped memory for tpu_custom_call.1']
    #allocation4 [shape = 's32[2]{0}', space=sflag, size = 0x8, scoped, tag = 'scoped memory for tpu_custom_call.1']
    #allocation5 [shape = 'u8[8192]{0}', space=vmem, size = 0x2000, scoped, tag = 'input window, operand 1']
    #allocation6 [shape = 's32[2]{0}', space=sflag, size = 0x8, scoped, tag = 'scoped memory for tpu_custom_call.1']
    #allocation7 [shape = 'u8[8192]{0}', space=vmem, size = 0x2000, scoped, tag = 'output window, operand 0']
    %7 = vsyncpa [#allocation3], 0
    %s8 = scalar_lea.sflag [#allocation3], 1
    %9 = vsyncpa %s8, 0
    %10 = vsyncpa [#allocation6], 0
    %s11 = scalar_lea.sflag [#allocation6], 1
    %12 = vsyncpa %s11, 0
    %13 = vsyncpa [#allocation4], 0
    %s14 = scalar_lea.sflag [#allocation4], 1
    %15 = vsyncpa %s14, 0
    loop: start=0, step=1, limit=4
    $region2: #{tpu_custom_call.1} parent=1 // loop_pre_header
      _
    $region3: #{tpu_custom_call.1} parent=1 // loop_header
      %s17 = sphi 0, %s21
      %p18 = scmp.ge.s32.totalorder %s17, 4
      %s24 = sphi 0, %s36
      %s25 = sphi 0, %s32
      %s26 = sphi 0, %s24
      %s27 = sphi 0, %s25
      %s28 = sphi 0, %s26
      %s29 = sphi 0, %s27
      %s41 = sphi 0, %s43
      %s44 = sphi 0, %s41
      %s45 = sphi 0, %s44
      %s61 = sphi 0, %s45
      %s69 = sphi 0, %s71
      %s72 = sphi 0, %s69
      %s73 = sphi 0, %s72
      %s89 = sphi 0, %s73
      %s95 = sphi 0, %s97
      %s98 = sphi 0, %s95
      %s99 = sphi 0, %s98
      %s115 = sphi 0, %s99
    $region4: #{tpu_custom_call.1} parent=1 // loop_header_branch
      %20 = sbr.rel (%p18) target = $region8
    $region5: #{tpu_custom_call.1} parent=1 // loop_body
      %s22 = ssub.s32 %s17, 1
      %s23 = ssub.s32 %s17, 2
      %s30 = sadd.s32 1, %s25
      %p31 = scmp.ge.s32.totalorder %s30, 1
      %s32 = scalar_select %p31, 0, %s30
      %s33 = sadd.s32 1, %s24
      %s34 = scalar_select %p31, %s33, %s24
      %p35 = scmp.ge.s32.totalorder %s34, 2
      %s36 = scalar_select %p35, 0, %s34
      %s37 = ssub.s32 %s24, %s36
      %s38 = ssub.s32 %s25, %s32
      %s39 = sor.u32 %s37, %s38
      %p40 = scmp.eq.s32.totalorder %s39, 0
      %s42 = sadd.s32 %s41, 1
      %s43 = scalar_select %p40, %s41, %s42
      %p46 = pneg %p40
      %p47 = scmp.eq.s32.totalorder %s17, 1
      %p48 = por %p46, %p47
      %p49 = scmp.ne.s32.totalorder %s41, %s44
      %p50 = scmp.eq.s32.totalorder %s17, 0
      %p51 = por %p49, %p50
      %p52 = scmp.ne.s32.totalorder %s41, %s44
      %p53 = scmp.eq.s32.totalorder %s22, 1
      %p54 = por %p52, %p53
      %p55 = scmp.ne.s32.totalorder %s44, %s45
      %p56 = scmp.eq.s32.totalorder %s22, 0
      %p57 = por %p55, %p56
      %p58 = scmp.ne.s32.totalorder %s44, %s45
      %p59 = scmp.eq.s32.totalorder %s23, 1
      %p60 = por %p58, %p59
      %p62 = scmp.ne.s32.totalorder %s45, %s61
      %p63 = scmp.eq.s32.totalorder %s23, 0
      %p64 = por %p62, %p63
      %s65 = ssub.s32 %s24, %s36
      %s66 = ssub.s32 %s25, %s32
      %s67 = sor.u32 %s65, %s66
      %p68 = scmp.eq.s32.totalorder %s67, 0
      %s70 = sadd.s32 %s69, 1
      %s71 = scalar_select %p68, %s69, %s70
      %p74 = pneg %p68
      %p75 = scmp.eq.s32.totalorder %s17, 1
      %p76 = por %p74, %p75
      %p77 = scmp.ne.s32.totalorder %s69, %s72
      %p78 = scmp.eq.s32.totalorder %s17, 0
      %p79 = por %p77, %p78
      %p80 = scmp.ne.s32.totalorder %s69, %s72
      %p81 = scmp.eq.s32.totalorder %s22, 1
      %p82 = por %p80, %p81
      %p83 = scmp.ne.s32.totalorder %s72, %s73
      %p84 = scmp.eq.s32.totalorder %s22, 0
      %p85 = por %p83, %p84
      %p86 = scmp.ne.s32.totalorder %s72, %s73
      %p87 = scmp.eq.s32.totalorder %s23, 1
      %p88 = por %p86, %p87
      %p90 = scmp.ne.s32.totalorder %s73, %s89
      %p91 = scmp.eq.s32.totalorder %s23, 0
      %p92 = por %p90, %p91
      %s93 = ssub.s32 %s24, %s36
      %p94 = scmp.eq.s32.totalorder %s93, 0
      %s96 = sadd.s32 %s95, 1
      %s97 = scalar_select %p94, %s95, %s96
      %p100 = pneg %p94
      %p101 = scmp.eq.s32.totalorder %s17, 1
      %p102 = por %p100, %p101
      %p103 = scmp.ne.s32.totalorder %s95, %s98
      %p104 = scmp.eq.s32.totalorder %s17, 0
      %p105 = por %p103, %p104
      %p106 = scmp.ne.s32.totalorder %s95, %s98
      %p107 = scmp.eq.s32.totalorder %s22, 1
      %p108 = por %p106, %p107
      %p109 = scmp.ne.s32.totalorder %s98, %s99
      %p110 = scmp.eq.s32.totalorder %s22, 0
      %p111 = por %p109, %p110
      %p112 = scmp.ne.s32.totalorder %s98, %s99
      %p113 = scmp.eq.s32.totalorder %s23, 1
      %p114 = por %p112, %p113
      %p116 = scmp.ne.s32.totalorder %s99, %s115
      %p117 = scmp.eq.s32.totalorder %s23, 0
      %p118 = por %p116, %p117
      %p119 = scmp.le.s32.totalorder 1, %s17
      %p120 = scmp.lt.s32.totalorder %s17, 3
      %p121 = pnand %p119, %p120
      %p122 = pneg %p121
      // Predicated region
      $region9: #{tpu_custom_call.1} parent=5 // pred_check
        _
      $region10: #{tpu_custom_call.1} parent=5 // pred_check_branch
        %124 = sbr.rel (%p121) target = $region12
      $region11: #{tpu_custom_call.1} parent=5 // pred_region
        %s125 = ssub.s32 %s17, 1
      $region12: #{tpu_custom_call.1} parent=5 // pred_fallthru
        _
      %p126 = scmp.lt.s32.totalorder %s17, 2
      // Predicated region
      $region13: #{tpu_custom_call.1} parent=5 // pred_check
        %p127 = pneg %p126
      $region14: #{tpu_custom_call.1} parent=5 // pred_check_branch
        %129 = sbr.rel (%p127) target = $region16
      $region15: #{tpu_custom_call.1} parent=5 // pred_region
        // Predicated region
        $region17: #{tpu_custom_call.1} parent=15 // pred_check
          %p130 = pneg %p51
        $region18: #{tpu_custom_call.1} parent=15 // pred_check_branch
          %132 = sbr.rel (%p130) target = $region20
        $region19: #{tpu_custom_call.1} parent=15 // pred_region
          %s133 = sand.u32 %s41, 1
          %s134 = scalar_lea.sflag [#allocation3], %s133
          %s135 = sand.u32 %s41, 1
          %s136 = smul.addr %s135, 16
          %s137 = scalar_lea.vmem [#allocation2], %s136
          %s139 = ssub.s32 256, 256
          %140 = vsyncadd %s134, %s139
          %s141 = smul.addr %s24, 2
          %s142 = sadd.s32 %s25, %s141
          %s143 = smul.addr %s142, 128
          %s144 = scalar_lea.hbm %s0, %s143
          %s145 = sshll.u32 %s137, 4
          %s146 = int_to_ptr.vmem [resolvable:$true] %s145
          %151 = dma.hbm_to_vmem [thread:$0]  %s144, 256, %s146, %s134, 128, 128, 8
        $region20: #{tpu_custom_call.1} parent=15 // pred_fallthru
          _
        // Predicated region
        $region21: #{tpu_custom_call.1} parent=15 // pred_check
          %p152 = pneg %p79
        $region22: #{tpu_custom_call.1} parent=15 // pred_check_branch
          %154 = sbr.rel (%p152) target = $region24
        $region23: #{tpu_custom_call.1} parent=15 // pred_region
          %s155 = sand.u32 %s69, 1
          %s156 = scalar_lea.sflag [#allocation6], %s155
          %s157 = sand.u32 %s69, 1
          %s158 = smul.addr %s157, 8
          %s159 = scalar_lea.vmem [#allocation5], %s158
          %s161 = ssub.s32 128, 128
          %162 = vsyncadd %s156, %s161
          %s163 = sadd.s32 %s25, %s24
          %s164 = smul.addr %s163, 128
          %s165 = scalar_lea.hbm %s1, %s164
          %s167 = sshll.u32 %s159, 4
          %s168 = int_to_ptr.vmem [resolvable:$true] %s167
          %170 = dma.hbm_to_vmem [thread:$0]  %s165, 128, %s168, %s156
        $region24: #{tpu_custom_call.1} parent=15 // pred_fallthru
          _
      $region16: #{tpu_custom_call.1} parent=5 // pred_fallthru
        _
      %p171 = scmp.le.s32.totalorder 1, %s17
      %p172 = scmp.lt.s32.totalorder %s17, 3
      %p173 = pnand %p171, %p172
      %p174 = pneg %p173
      // Predicated region
      $region25: #{tpu_custom_call.1} parent=5 // pred_check
        _
      $region26: #{tpu_custom_call.1} parent=5 // pred_check_branch
        %176 = sbr.rel (%p173) target = $region28
      $region27: #{tpu_custom_call.1} parent=5 // pred_region
        %s177 = ssub.s32 %s17, 1
        %s178 = sand.u32 %s44, 1
        %s179 = scalar_lea.sflag [#allocation3], %s178
        %s180 = sand.u32 %s44, 1
        %s181 = smul.addr %s180, 16
        %s182 = scalar_lea.vmem [#allocation2], %s181
        // Predicated region
        $region29: #{tpu_custom_call.1} parent=27 // pred_check
          %p183 = pneg %p57
        $region30: #{tpu_custom_call.1} parent=27 // pred_check_branch
          %185 = sbr.rel (%p183) target = $region32
        $region31: #{tpu_custom_call.1} parent=27 // pred_region
          %186 = dma.done %s179, 256
        $region32: #{tpu_custom_call.1} parent=27 // pred_fallthru
          _
        %s187 = sand.u32 %s72, 1
        %s188 = scalar_lea.sflag [#allocation6], %s187
        %s189 = sand.u32 %s72, 1
        %s190 = smul.addr %s189, 8
        %s191 = scalar_lea.vmem [#allocation5], %s190
        // Predicated region
        $region33: #{tpu_custom_call.1} parent=27 // pred_check
          %p192 = pneg %p85
        $region34: #{tpu_custom_call.1} parent=27 // pred_check_branch
          %194 = sbr.rel (%p192) target = $region36
        $region35: #{tpu_custom_call.1} parent=27 // pred_region
          %195 = dma.done %s188, 128
        $region36: #{tpu_custom_call.1} parent=27 // pred_fallthru
          _
        %s196 = sand.u32 %s44, 1
        %s197 = scalar_lea.sflag [#allocation3], %s196
        %s198 = sand.u32 %s44, 1
        %s199 = smul.addr %s198, 16
        %s200 = scalar_lea.vmem [#allocation2], %s199
        %p201 = pneg %p57
        %p202 = pneg %p54
        %s203 = sand.u32 %s72, 1
        %s204 = scalar_lea.sflag [#allocation6], %s203
        %s205 = sand.u32 %s72, 1
        %s206 = smul.addr %s205, 8
        %s207 = scalar_lea.vmem [#allocation5], %s206
        %p208 = pneg %p85
        %p209 = pneg %p82
        %p210 = pneg %p111
        %p211 = pneg %p108
        %s212 = sand.u32 %s98, 1
        %s213 = scalar_lea.sflag [#allocation4], %s212
        %s214 = sand.u32 %s98, 1
        %s215 = smul.addr %s214, 8
        %s216 = scalar_lea.vmem [#allocation7], %s215
        %v217 = vld [vmem:[%s182] sm:$0xff]
        %v218 = vld [vmem:[%s182 + $0x8] sm:$0xff]
        %v219 = vld [vmem:[%s191] sm:$0xff]
        %v220 = vmax.f32 %v217, %v218
        %v221 = vsub.f32 %v217, %v220
        %v222 = vsub.f32 %v218, %v220
        %v223 = vmul.f32 %v221, 1.442695
        %v224 = vpow.pop %v223
        %v225 = vmul.f32 %v222, 1.442695
        %v226 = vpow.pop %v225
        %v227 = vadd.f32 %v224, %v226
        %v228 = vlog2.pop %v227
        %v229 = vmul.f32 %v228, 0.6931472
        %v230 = vsub.f32 %v221, %v229
        %v231 = vsub.f32 %v222, %v229
        %vm232 = vcmp.eq.s32.totalorder %v219, 0
        %vm233 = vcmp.eq.s32.totalorder %v219, 1
        %v234 = vsel %vm232, 1, 0
        %v235 = vsel %vm233, 1, 0
        %v236 = vcvt.s32.f32 %v234
        %v237 = vcvt.s32.f32 %v235
        %v238 = vmul.f32 %v230, %v236
        %v239 = vmul.f32 %v231, %v237
        %v240 = vadd.f32 %v238, %v239
        %v241 = vmul.f32 %v240, 1.442695
        %v242 = vpow.pop %v241
        %v243 = vmul.f32 %v236, 0.25
        %v244 = vadd.f32 %v243, 0.0
        %v245 = vmul.f32 %v237, 0.75
        %v246 = vadd.f32 %v244, %v245
        %v247 = vmul.f32 %v240, %v246
        %v248 = vsub.f32 1.0, %v242
        %v249 = vmul.f32 %v248, %v248
        %v250 = vsub.f32 0.0, %v249
        %v251 = vmul.f32 %v250, %v247
        %v252 = vlaneseq
        %v253 = vshrl.u32 %v252, 7
        %v254 = vlaneseq
        %v255 = vand.u32 %v254, 127
        %s256 = smul.u32 %s27, 1024
        %v257 = vmul.u32 %v253, 128
        %v258 = vstv %s256
        %v259 = vadd.s32 %v258, %v257
        %v260 = vadd.s32 %v259, %v255
        %vm261 = vcmp.lt.s32.totalorder %v260, 256
        %v262 = vsel %vm261, %v251, 0.0
        %v263 = vadd.f32 %v262, 0.0
        %p264 = scmp.eq.s32.totalorder %s27, 0
        // Predicated region
        $region37: #{tpu_custom_call.1} parent=27 // pred_check
          %p265 = pneg %p264
        $region38: #{tpu_custom_call.1} parent=27 // pred_check_branch
          %267 = sbr.rel (%p265) target = $region40
        $region39: #{tpu_custom_call.1} parent=27 // pred_region
          %268 = vst [vmem:[%s216] sm:$0xff] 0.0
        $region40: #{tpu_custom_call.1} parent=27 // pred_fallthru
          _
        %v269 = vld [vmem:[%s216] sm:$0xff]
        %v270 = vadd.f32 %v269, %v263
        %271 = vst [vmem:[%s216] sm:$0xff] %v270
        %s272 = sand.u32 %s98, 1
        %s273 = scalar_lea.sflag [#allocation4], %s272
        %s274 = sand.u32 %s98, 1
        %s275 = smul.addr %s274, 8
        %s276 = scalar_lea.vmem [#allocation7], %s275
        // Predicated region
        $region41: #{tpu_custom_call.1} parent=27 // pred_check
          %p277 = pneg %p108
        $region42: #{tpu_custom_call.1} parent=27 // pred_check_branch
          %279 = sbr.rel (%p277) target = $region44
        $region43: #{tpu_custom_call.1} parent=27 // pred_region
          %s281 = ssub.s32 128, 128
          %282 = vsyncadd %s273, %s281
          %s283 = smul.addr %s26, 128
          %s284 = scalar_lea.hbm %s2, %s283
          %s286 = sshll.u32 %s276, 4
          %s287 = int_to_ptr.vmem [resolvable:$true] %s286
          %289 = dma.vmem_to_hbm [thread:$0]  %s287, 128, %s284, %s273
        $region44: #{tpu_custom_call.1} parent=27 // pred_fallthru
          _
      $region28: #{tpu_custom_call.1} parent=5 // pred_fallthru
        _
      %p290 = scmp.le.s32.totalorder 2, %s17
      // Predicated region
      $region45: #{tpu_custom_call.1} parent=5 // pred_check
        %p291 = pneg %p290
      $region46: #{tpu_custom_call.1} parent=5 // pred_check_branch
        %293 = sbr.rel (%p291) target = $region48
      $region47: #{tpu_custom_call.1} parent=5 // pred_region
        %s294 = ssub.s32 %s17, 2
        // Predicated region
        $region49: #{tpu_custom_call.1} parent=47 // pred_check
          %p295 = pneg %p114
        $region50: #{tpu_custom_call.1} parent=47 // pred_check_branch
          %297 = sbr.rel (%p295) target = $region52
        $region51: #{tpu_custom_call.1} parent=47 // pred_region
          %s298 = sand.u32 %s99, 1
          %s299 = scalar_lea.sflag [#allocation4], %s298
          %s300 = sand.u32 %s99, 1
          %s301 = smul.addr %s300, 8
          %s302 = scalar_lea.vmem [#allocation7], %s301
          %303 = dma.done %s299, 128
        $region52: #{tpu_custom_call.1} parent=47 // pred_fallthru
          _
      $region48: #{tpu_custom_call.1} parent=5 // pred_fallthru
        _
    $region6: #{tpu_custom_call.1} parent=1 // loop_footer
      %s21 = sadd.s32 1, %s17
    $region7: #{tpu_custom_call.1} parent=1 // loop_footer_branch
      %16 = sbr.rel target = $region3
    $region8: #{tpu_custom_call.1} parent=1 // loop_exit
      _
    %304 = vsyncpa [#allocation3], 1
    %s305 = scalar_lea.sflag [#allocation3], 1
    %306 = vsyncpa %s305, 1
    %307 = vsyncpa [#allocation6], 1
    %s308 = scalar_lea.sflag [#allocation6], 1
    %309 = vsyncpa %s308, 1
    %310 = vsyncpa [#allocation4], 1
    %s311 = scalar_lea.sflag [#allocation4], 1
    %312 = vsyncpa %s311, 1

</llo_original>
